<compile_context>
chip_gen: v5e
topology: v5e:2x2
jax: 0.10.0
libtpu: 0.0.40
codegen_flags: <defaults>
</compile_context>

<pallas_src>
import jax
import jax.numpy as jnp
from jax.experimental import pallas as pl
from jax.experimental.pallas import tpu as pltpu

HIDDEN = 128
LANE = 128


def qnetwork_kernel(x_ref, w1_ref, b1_ref, w2_ref, b2_ref, w3_ref, b3_ref,
                    out_ref):
    x = x_ref[...]                                  # (TB, S)  f32
    w1 = w1_ref[...]                                # (S, H)   f32

    # --- fc1: tiny K (=state_dim) contraction on the VPU via broadcast-FMAs.
    h1 = b1_ref[...]                                # (1, H) f32, broadcasts up
    for s in range(x_ref.shape[1]):                 # static unroll (S is tiny)
        h1 = h1 + x[:, s:s + 1] * w1[s:s + 1, :]
    h1 = jnp.maximum(h1, 0.0)                       # (TB, H) f32

    # --- fc2: bf16 MXU matmul, f32 accumulation; bias/ReLU in f32.
    h2 = jnp.dot(h1.astype(jnp.bfloat16), w2_ref[...],
                 preferred_element_type=jnp.float32)
    h2 = jnp.maximum(h2 + b2_ref[...], 0.0)         # (TB, H) f32

    # --- fc3: bf16 MXU matmul into the lane-padded output (TB, 128).
    y = jnp.dot(h2.astype(jnp.bfloat16), w3_ref[...],
                preferred_element_type=jnp.float32)
    out_ref[...] = (y + b3_ref[...]).astype(out_ref.dtype)


def _round_up(x, m):
    return ((x + m - 1) // m) * m


def _choose_batch_tiling(B, max_tb=1024):
    """Pick (tb, B_pad, n_steps) for the batch grid axis.

    - Small batches (<=256): one grid step; the kernel is overhead-bound.
    - Medium batches: exactly 2 steps so v7x's two TensorCores both engage.
    - Large batches: tb=1024 tiles to amortize per-step pipeline overhead.
    """
    B8 = _round_up(max(B, 1), 8)
    if B8 <= 256:
        return B8, B8, 1
    if B8 <= 2 * max_tb:
        tb = _round_up(pl.cdiv(B8, 2), 8)
        return tb, 2 * tb, 2
    tb = max_tb
    B_pad = _round_up(B8, tb)
    return tb, B_pad, B_pad // tb


def qnetwork_forward(x, params, *, max_tb=1024, out_dtype=jnp.float32):
    """x: (B, state_dim) float32.  params: dict w1,b1,w2,b2,w3,b3.

    Returns (B, action_dim) Q-values (out_dtype; default f32 = PyTorch math).
    Pass out_dtype=jnp.bfloat16 to halve output HBM writeback (fine for
    argmax / action selection; biggest win on v5e).
    """
    w1 = params["w1"].astype(jnp.float32)           # (S, H)
    b1 = params["b1"].astype(jnp.float32)           # (1, H)
    w2 = params["w2"].astype(jnp.bfloat16)          # (H, H)
    b2 = params["b2"].astype(jnp.float32)           # (1, H)
    w3 = params["w3"]                               # (H, A)
    b3 = params["b3"]                               # (1, A)

    B, S = x.shape
    H = w2.shape[0]
    A = w3.shape[1]

    # Pad action dim to a full lane width (zeros in the padded columns).
    A_pad = max(LANE, _round_up(A, LANE))
    w3p = jnp.zeros((H, A_pad), jnp.float32).at[:, :A].set(
        w3.astype(jnp.float32)).astype(jnp.bfloat16)
    b3p = jnp.zeros((1, A_pad), jnp.float32).at[:, :A].set(
        b3.astype(jnp.float32))

    # Choose batch tile / grid, then pad batch so every block is dense.
    tb, B_pad, n_steps = _choose_batch_tiling(B, max_tb)
    x_p = jnp.zeros((B_pad, S), jnp.float32).at[:B, :].set(
        x.astype(jnp.float32))

    const2 = lambda i: (0, 0)                       # resident weights/biases

    # Advisory cost estimate so XLA schedules this tiny custom call sensibly.
    flops = 2 * B_pad * (S * H + H * H + H * A_pad)
    bytes_in = (B_pad * S * 4                       # x
                + S * H * 4 + H * 4                 # w1, b1 (f32)
                + H * H * 2 + H * 4                 # w2 (bf16), b2 (f32)
                + H * A_pad * 2 + A_pad * 4)        # w3p (bf16), b3p (f32)
    bytes_out = B_pad * A_pad * jnp.dtype(out_dtype).itemsize
    cost = pl.CostEstimate(flops=flops, transcendentals=0,
                           bytes_accessed=bytes_in + bytes_out)

    out = pl.pallas_call(
        qnetwork_kernel,
        out_shape=jax.ShapeDtypeStruct((B_pad, A_pad), out_dtype),
        grid_spec=pltpu.PrefetchScalarGridSpec(
            num_scalar_prefetch=0,
            grid=(n_steps,),
            in_specs=[
                pl.BlockSpec((tb, S), lambda i: (i, 0)),     # x tile
                pl.BlockSpec((S, H), const2),                # w1
                pl.BlockSpec((1, H), const2),                # b1
                pl.BlockSpec((H, H), const2),                # w2 (bf16)
                pl.BlockSpec((1, H), const2),                # b2
                pl.BlockSpec((H, A_pad), const2),            # w3 padded (bf16)
                pl.BlockSpec((1, A_pad), const2),            # b3 padded
            ],
            out_specs=pl.BlockSpec((tb, A_pad), lambda i: (i, 0)),
        ),
        compiler_params=pltpu.CompilerParams(
            dimension_semantics=("parallel",)),
        cost_estimate=cost,
    )(x_p, w1, b1, w2, b2, w3p, b3p)

    return out[:B, :A]


def init_params(key, state_dim, action_dim, hidden=HIDDEN):
    """Deterministic synthetic init (PyTorch-Linear-style uniform bounds)."""
    def linear(key, fan_in, fan_out):
        kw, kb = jax.random.split(key)
        bound = 1.0 / jnp.sqrt(fan_in)
        w = jax.random.uniform(kw, (fan_in, fan_out), jnp.float32,
                               minval=-bound, maxval=bound)
        b = jax.random.uniform(kb, (1, fan_out), jnp.float32,
                               minval=-bound, maxval=bound)
        return w, b

    k1, k2, k3 = jax.random.split(key, 3)
    w1, b1 = linear(k1, state_dim, hidden)
    w2, b2 = linear(k2, hidden, hidden)
    w3, b3 = linear(k3, hidden, action_dim)
    return dict(w1=w1, b1=b1, w2=w2, b2=b2, w3=w3, b3=b3)


def qnetwork_ref_f32(x, p):
    """Pure f32 reference (the PyTorch math)."""
    h1 = jnp.maximum(x @ p["w1"] + p["b1"], 0.0)
    h2 = jnp.maximum(h1 @ p["w2"] + p["b2"], 0.0)
    return h2 @ p["w3"] + p["b3"]


def qnetwork_ref_mixed(x, p):
    """Reference mirroring the kernel's mixed precision (bf16 MXU, f32 acc)."""
    h1 = p["b1"]
    for s in range(x.shape[1]):
        h1 = h1 + x[:, s:s + 1] * p["w1"][s:s + 1, :]
    h1 = jnp.maximum(h1, 0.0)
    h2 = jnp.dot(h1.astype(jnp.bfloat16), p["w2"].astype(jnp.bfloat16),
                 preferred_element_type=jnp.float32)
    h2 = jnp.maximum(h2 + p["b2"], 0.0)
    y = jnp.dot(h2.astype(jnp.bfloat16), p["w3"].astype(jnp.bfloat16),
                preferred_element_type=jnp.float32)
    return y + p["b3"]


if __name__ == "__main__":
    state_dim = 3      # Pendulum-v1 observation dim
    action_dim = 11    # discrete_actions

    key = jax.random.PRNGKey(0)
    kx, kx2, kp = jax.random.split(key, 3)
    params = init_params(kp, state_dim, action_dim)

    # --- Small DQN batch (single grid step path).
    batch = 8
    x = jax.random.normal(kx, (batch, state_dim), jnp.float32)
    out = qnetwork_forward(x, params)
    jax.block_until_ready(out)
    assert out.shape == (batch, action_dim)

    ref_mixed = qnetwork_ref_mixed(x, params)
    assert jnp.allclose(out, ref_mixed, atol=2e-3, rtol=2e-3), (
        jnp.max(jnp.abs(out - ref_mixed)))
    ref_f32 = qnetwork_ref_f32(x, params)
    assert jnp.allclose(out, ref_f32, atol=1e-1, rtol=1e-1), (
        jnp.max(jnp.abs(out - ref_f32)))

    # --- bf16-output path (cheaper writeback, fine for action selection).
    out_bf16 = qnetwork_forward(x, params, out_dtype=jnp.bfloat16)
    jax.block_until_ready(out_bf16)
    assert out_bf16.dtype == jnp.bfloat16
    assert jnp.allclose(out_bf16.astype(jnp.float32), ref_mixed,
                        atol=3e-2, rtol=3e-2)

    # --- Medium batch (exercises the 2-step grid / v7x dual-TC path).
    batch2 = 600
    x2 = jax.random.normal(kx2, (batch2, state_dim), jnp.float32)
    out2 = qnetwork_forward(x2, params)
    jax.block_until_ready(out2)
    assert out2.shape == (batch2, action_dim)
    ref2 = qnetwork_ref_mixed(x2, params)
    assert jnp.allclose(out2, ref2, atol=2e-3, rtol=2e-3), (
        jnp.max(jnp.abs(out2 - ref2)))

    print("KERNEL_OK")
</pallas_src>

<mosaic_0001>
module attributes {stable_mosaic.version = 11 : i64} {
  func.func @qnetwork_kernel(%arg0: i32, %arg1: memref<8x3xf32, #tpu.memory_space<vmem>>, %arg2: memref<3x128xf32, #tpu.memory_space<vmem>>, %arg3: memref<1x128xf32, #tpu.memory_space<vmem>>, %arg4: memref<128x128xbf16, #tpu.memory_space<vmem>>, %arg5: memref<1x128xf32, #tpu.memory_space<vmem>>, %arg6: memref<128x128xbf16, #tpu.memory_space<vmem>>, %arg7: memref<1x128xf32, #tpu.memory_space<vmem>>, %arg8: memref<8x128xf32, #tpu.memory_space<vmem>>) attributes {dimension_semantics = [#tpu.dimension_semantics<parallel>], iteration_bounds = array<i64: 1>, scalar_prefetch = 0 : i64, scratch_operands = 0 : i64, tpu.core_type = #tpu.core_type<tc>, window_params = [{transform_indices = @transform_0, window_bounds = array<i64: 8, 3>}, {pipeline_mode = #tpu.pipeline_mode<synchronous>, transform_indices = @transform_1, window_bounds = array<i64: 3, 128>}, {pipeline_mode = #tpu.pipeline_mode<synchronous>, transform_indices = @transform_2, window_bounds = array<i64: 1, 128>}, {pipeline_mode = #tpu.pipeline_mode<synchronous>, transform_indices = @transform_3, window_bounds = array<i64: 128, 128>}, {pipeline_mode = #tpu.pipeline_mode<synchronous>, transform_indices = @transform_4, window_bounds = array<i64: 1, 128>}, {pipeline_mode = #tpu.pipeline_mode<synchronous>, transform_indices = @transform_5, window_bounds = array<i64: 128, 128>}, {pipeline_mode = #tpu.pipeline_mode<synchronous>, transform_indices = @transform_6, window_bounds = array<i64: 1, 128>}, {transform_indices = @transform_7, window_bounds = array<i64: 8, 128>}]} {
    %c0 = arith.constant 0 : index
    %c0_0 = arith.constant 0 : index
    %0 = vector.load %arg1[%c0, %c0_0] : memref<8x3xf32, #tpu.memory_space<vmem>>, vector<8x3xf32>
    %c0_1 = arith.constant 0 : index
    %c0_2 = arith.constant 0 : index
    %1 = vector.load %arg2[%c0_1, %c0_2] : memref<3x128xf32, #tpu.memory_space<vmem>>, vector<3x128xf32>
    %c0_3 = arith.constant 0 : index
    %c0_4 = arith.constant 0 : index
    %2 = vector.load %arg3[%c0_3, %c0_4] : memref<1x128xf32, #tpu.memory_space<vmem>>, vector<1x128xf32>
    %3 = vector.extract_strided_slice %0 {offsets = [0, 0], sizes = [8, 1], strides = [1, 1]} : vector<8x3xf32> to vector<8x1xf32>
    %4 = vector.extract_strided_slice %1 {offsets = [0, 0], sizes = [1, 128], strides = [1, 1]} : vector<3x128xf32> to vector<1x128xf32>
    %5 = vector.broadcast %3 : vector<8x1xf32> to vector<8x128xf32>
    %6 = vector.broadcast %4 : vector<1x128xf32> to vector<8x128xf32>
    %7 = arith.mulf %5, %6 : vector<8x128xf32>
    %8 = vector.broadcast %2 : vector<1x128xf32> to vector<8x128xf32>
    %9 = arith.addf %8, %7 : vector<8x128xf32>
    %10 = vector.extract_strided_slice %0 {offsets = [0, 1], sizes = [8, 1], strides = [1, 1]} : vector<8x3xf32> to vector<8x1xf32>
    %11 = vector.extract_strided_slice %1 {offsets = [1, 0], sizes = [1, 128], strides = [1, 1]} : vector<3x128xf32> to vector<1x128xf32>
    %12 = vector.broadcast %10 : vector<8x1xf32> to vector<8x128xf32>
    %13 = vector.broadcast %11 : vector<1x128xf32> to vector<8x128xf32>
    %14 = arith.mulf %12, %13 : vector<8x128xf32>
    %15 = arith.addf %9, %14 : vector<8x128xf32>
    %16 = vector.extract_strided_slice %0 {offsets = [0, 2], sizes = [8, 1], strides = [1, 1]} : vector<8x3xf32> to vector<8x1xf32>
    %17 = vector.extract_strided_slice %1 {offsets = [2, 0], sizes = [1, 128], strides = [1, 1]} : vector<3x128xf32> to vector<1x128xf32>
    %18 = vector.broadcast %16 : vector<8x1xf32> to vector<8x128xf32>
    %19 = vector.broadcast %17 : vector<1x128xf32> to vector<8x128xf32>
    %20 = arith.mulf %18, %19 : vector<8x128xf32>
    %21 = arith.addf %15, %20 : vector<8x128xf32>
    %cst = arith.constant 0.000000e+00 : f32
    %22 = vector.broadcast %cst : f32 to vector<8x128xf32>
    %23 = arith.maximumf %21, %22 : vector<8x128xf32>
    %24 = arith.truncf %23 : vector<8x128xf32> to vector<8x128xbf16>
    %c0_5 = arith.constant 0 : index
    %c0_6 = arith.constant 0 : index
    %25 = vector.load %arg4[%c0_5, %c0_6] : memref<128x128xbf16, #tpu.memory_space<vmem>>, vector<128x128xbf16>
    %cst_7 = arith.constant dense<0.000000e+00> : vector<8x128xf32>
    %26 = tpu.matmul %24, %25, %cst_7 {dimension_numbers = #tpu.dot_dimension_numbers<[1], [0], [0], [1], [0, 0, 1, 1], [], []>} : vector<8x128xbf16>, vector<128x128xbf16>, vector<8x128xf32> -> vector<8x128xf32>
    %c0_8 = arith.constant 0 : index
    %c0_9 = arith.constant 0 : index
    %27 = vector.load %arg5[%c0_8, %c0_9] : memref<1x128xf32, #tpu.memory_space<vmem>>, vector<1x128xf32>
    %28 = vector.broadcast %27 : vector<1x128xf32> to vector<8x128xf32>
    %29 = arith.addf %26, %28 : vector<8x128xf32>
    %cst_10 = arith.constant 0.000000e+00 : f32
    %30 = vector.broadcast %cst_10 : f32 to vector<8x128xf32>
    %31 = arith.maximumf %29, %30 : vector<8x128xf32>
    %32 = arith.truncf %31 : vector<8x128xf32> to vector<8x128xbf16>
    %c0_11 = arith.constant 0 : index
    %c0_12 = arith.constant 0 : index
    %33 = vector.load %arg6[%c0_11, %c0_12] : memref<128x128xbf16, #tpu.memory_space<vmem>>, vector<128x128xbf16>
    %cst_13 = arith.constant dense<0.000000e+00> : vector<8x128xf32>
    %34 = tpu.matmul %32, %33, %cst_13 {dimension_numbers = #tpu.dot_dimension_numbers<[1], [0], [0], [1], [0, 0, 1, 1], [], []>} : vector<8x128xbf16>, vector<128x128xbf16>, vector<8x128xf32> -> vector<8x128xf32>
    %c0_14 = arith.constant 0 : index
    %c0_15 = arith.constant 0 : index
    %35 = vector.load %arg7[%c0_14, %c0_15] : memref<1x128xf32, #tpu.memory_space<vmem>>, vector<1x128xf32>
    %36 = vector.broadcast %35 : vector<1x128xf32> to vector<8x128xf32>
    %37 = arith.addf %34, %36 : vector<8x128xf32>
    %c0_16 = arith.constant 0 : index
    %c0_17 = arith.constant 0 : index
    %38 = vector.load %arg8[%c0_16, %c0_17] : memref<8x128xf32, #tpu.memory_space<vmem>>, vector<8x128xf32>
    tpu.vector_store %arg8[%c0_16, %c0_17], %37 {strides = array<i32>} : memref<8x128xf32, #tpu.memory_space<vmem>>, vector<8x128xf32>,
    return
  }
  func.func @transform_0(%arg0: i32) -> (i32, i32) {
    %c0_i32 = arith.constant 0 : i32
    %c0_i32_0 = arith.constant 0 : i32
    return %arg0, %c0_i32 : i32, i32
  }
  func.func @transform_1(%arg0: i32) -> (i32, i32) {
    %c0_i32 = arith.constant 0 : i32
    %c0_i32_0 = arith.constant 0 : i32
    %c0_i32_1 = arith.constant 0 : i32
    return %c0_i32, %c0_i32_0 : i32, i32
  }
  func.func @transform_2(%arg0: i32) -> (i32, i32) {
    %c0_i32 = arith.constant 0 : i32
    %c0_i32_0 = arith.constant 0 : i32
    %c0_i32_1 = arith.constant 0 : i32
    return %c0_i32, %c0_i32_0 : i32, i32
  }
  func.func @transform_3(%arg0: i32) -> (i32, i32) {
    %c0_i32 = arith.constant 0 : i32
    %c0_i32_0 = arith.constant 0 : i32
    %c0_i32_1 = arith.constant 0 : i32
    return %c0_i32, %c0_i32_0 : i32, i32
  }
  func.func @transform_4(%arg0: i32) -> (i32, i32) {
    %c0_i32 = arith.constant 0 : i32
    %c0_i32_0 = arith.constant 0 : i32
    %c0_i32_1 = arith.constant 0 : i32
    return %c0_i32, %c0_i32_0 : i32, i32
  }
  func.func @transform_5(%arg0: i32) -> (i32, i32) {
    %c0_i32 = arith.constant 0 : i32
    %c0_i32_0 = arith.constant 0 : i32
    %c0_i32_1 = arith.constant 0 : i32
    return %c0_i32, %c0_i32_0 : i32, i32
  }
  func.func @transform_6(%arg0: i32) -> (i32, i32) {
    %c0_i32 = arith.constant 0 : i32
    %c0_i32_0 = arith.constant 0 : i32
    %c0_i32_1 = arith.constant 0 : i32
    return %c0_i32, %c0_i32_0 : i32, i32
  }
  func.func @transform_7(%arg0: i32) -> (i32, i32) {
    %c0_i32 = arith.constant 0 : i32
    %c0_i32_0 = arith.constant 0 : i32
    return %arg0, %c0_i32 : i32, i32
  }
}

</mosaic_0001>

<llo_original>
// kernel: tpu_custom_call.1
$region0: #{tpu_custom_call.1}
  #allocation0 [shape = 'u32[]', space=smem, size = 0x4, offset = 0x4, fixed_abs, tag = 'smem constant byte address 0x4 - core index']
  #allocation1 [shape = 'u32[72,128]{1,0:T(1,128)}', space=vmem, size = 0x9000, scoped, tag = 'internal scratch']
  %s0 = inlined_call_operand.vmem [shape: f32[8,3], index: 0, kind: input, shape index: {}]
  %s1 = inlined_call_operand.vmem [shape: f32[3,128], index: 1, kind: input, shape index: {}]
  %s2 = inlined_call_operand.vmem [shape: f32[1,128], index: 2, kind: input, shape index: {}]
  %s3 = inlined_call_operand.hbm [shape: bf16[128,128], index: 3, kind: input, shape index: {}]
  %s4 = inlined_call_operand.vmem [shape: f32[1,128], index: 4, kind: input, shape index: {}]
  %s5 = inlined_call_operand.hbm [shape: bf16[128,128], index: 5, kind: input, shape index: {}]
  %s6 = inlined_call_operand.vmem [shape: f32[1,128], index: 6, kind: input, shape index: {}]
  %s7 = inlined_call_operand.hbm [shape: f32[8,128], index: 7, kind: output, shape index: {}]
  %s8 = sld [smem:[#allocation0]]
  $region46: #{tpu_custom_call.1} parent=0
    _
  %s10 = ssub.s32 1, %s8
  %s11 = scalar_select 0, %s10, %s8
  $region1: #{tpu_custom_call.1} parent=0
    #allocation2 [shape = 'u8[32768]{0}', space=vmem, size = 0x8000, scoped, tag = 'input window, operand 3, single buffered']
    #allocation3 [shape = 's32[1]{0}', space=sflag, size = 0x4, scoped, tag = 'scoped memory for tpu_custom_call.1']
    #allocation4 [shape = 's32[1]{0}', space=sflag, size = 0x4, scoped, tag = 'scoped memory for tpu_custom_call.1']
    #allocation5 [shape = 'u8[32768]{0}', space=vmem, size = 0x8000, scoped, tag = 'input window, operand 5, single buffered']
    #allocation6 [shape = 's32[1]{0}', space=sflag, size = 0x4, scoped, tag = 'scoped memory for tpu_custom_call.1']
    #allocation7 [shape = 'u8[4096]{0}', space=vmem, size = 0x1000, scoped, tag = 'output window, operand 0, single buffered']
    %12 = vsyncpa [#allocation3], 0
    %13 = vsyncpa [#allocation6], 0
    %14 = vsyncpa [#allocation4], 0
    // Predicated region
    $region2: #{tpu_custom_call.1} parent=1 // pred_check
      _
    $region3: #{tpu_custom_call.1} parent=1 // pred_check_branch
      %16 = sbr.rel (0) target = $region5
    $region4: #{tpu_custom_call.1} parent=1 // pred_region
      _
    $region5: #{tpu_custom_call.1} parent=1 // pred_fallthru
      _
    // Predicated region
    $region6: #{tpu_custom_call.1} parent=1 // pred_check
      _
    $region7: #{tpu_custom_call.1} parent=1 // pred_check_branch
      %18 = sbr.rel (0) target = $region9
    $region8: #{tpu_custom_call.1} parent=1 // pred_region
      _
    $region9: #{tpu_custom_call.1} parent=1 // pred_fallthru
      _
    // Predicated region
    $region10: #{tpu_custom_call.1} parent=1 // pred_check
      _
    $region11: #{tpu_custom_call.1} parent=1 // pred_check_branch
      %20 = sbr.rel (0) target = $region13
    $region12: #{tpu_custom_call.1} parent=1 // pred_region
      _
    $region13: #{tpu_custom_call.1} parent=1 // pred_fallthru
      _
    // Predicated region
    $region14: #{tpu_custom_call.1} parent=1 // pred_check
      _
    $region15: #{tpu_custom_call.1} parent=1 // pred_check_branch
      %22 = sbr.rel (0) target = $region17
    $region16: #{tpu_custom_call.1} parent=1 // pred_region
      %24 = vsyncadd [#allocation3], 0
      %s25 = sshll.u32 %s3, 4
      %s26 = int_to_ptr.hbm [resolvable:$true] %s25
      %s27 = sshll.u32 [#allocation2], 4
      %s28 = int_to_ptr.vmem [resolvable:$true] %s27
      %33 = dma.hbm_to_vmem [thread:$0]  %s26, 1024, %s28, [#allocation3], 64, 64, 4
    $region17: #{tpu_custom_call.1} parent=1 // pred_fallthru
      _
    // Predicated region
    $region18: #{tpu_custom_call.1} parent=1 // pred_check
      _
    $region19: #{tpu_custom_call.1} parent=1 // pred_check_branch
      %35 = sbr.rel (0) target = $region21
    $region20: #{tpu_custom_call.1} parent=1 // pred_region
      _
    $region21: #{tpu_custom_call.1} parent=1 // pred_fallthru
      _
    // Predicated region
    $region22: #{tpu_custom_call.1} parent=1 // pred_check
      _
    $region23: #{tpu_custom_call.1} parent=1 // pred_check_branch
      %37 = sbr.rel (0) target = $region25
    $region24: #{tpu_custom_call.1} parent=1 // pred_region
      %39 = vsyncadd [#allocation6], 0
      %s40 = sshll.u32 %s5, 4
      %s41 = int_to_ptr.hbm [resolvable:$true] %s40
      %s42 = sshll.u32 [#allocation5], 4
      %s43 = int_to_ptr.vmem [resolvable:$true] %s42
      %48 = dma.hbm_to_vmem [thread:$0]  %s41, 1024, %s43, [#allocation6], 64, 64, 4
    $region25: #{tpu_custom_call.1} parent=1 // pred_fallthru
      _
    // Predicated region
    $region26: #{tpu_custom_call.1} parent=1 // pred_check
      _
    $region27: #{tpu_custom_call.1} parent=1 // pred_check_branch
      %50 = sbr.rel (0) target = $region29
    $region28: #{tpu_custom_call.1} parent=1 // pred_region
      _
    $region29: #{tpu_custom_call.1} parent=1 // pred_fallthru
      _
    // Predicated region
    $region30: #{tpu_custom_call.1} parent=1 // pred_check
      _
    $region31: #{tpu_custom_call.1} parent=1 // pred_check_branch
      %52 = sbr.rel (0) target = $region33
    $region32: #{tpu_custom_call.1} parent=1 // pred_region
      %54 = dma.done [#allocation3], 1024
    $region33: #{tpu_custom_call.1} parent=1 // pred_fallthru
      _
    // Predicated region
    $region34: #{tpu_custom_call.1} parent=1 // pred_check
      _
    $region35: #{tpu_custom_call.1} parent=1 // pred_check_branch
      %56 = sbr.rel (0) target = $region37
    $region36: #{tpu_custom_call.1} parent=1 // pred_region
      %58 = dma.done [#allocation6], 1024
    $region37: #{tpu_custom_call.1} parent=1 // pred_fallthru
      _
    %v59 = vld [vmem:[%s0] sm:$0xff]
    %v60 = vld [vmem:[%s1] sm:$0x7]
    %v61 = vld [vmem:[%s2] sm:$0x1]
    %63 = vset.pattern.permute.xlu0 0
    %64 = vperm.xlu0 %63, %v59
    %v65 = vpop.permute.xlu0 %64
    %v67 = vperm.slane %v60, 0
    %v68 = vmul.f32 %v65, %v67
    %v70 = vperm.slane %v61, 0
    %v72 = vadd.f32 %v70, %v68
    %73 = vset.pattern.permute.xlu0 1
    %74 = vperm.xlu0 %73, %v59
    %v75 = vpop.permute.xlu0 %74
    %v77 = vperm.slane %v60, 1
    %v78 = vmul.f32 %v75, %v77
    %v79 = vadd.f32 %v72, %v78
    %80 = vset.pattern.permute.xlu0 2
    %81 = vperm.xlu0 %80, %v59
    %v82 = vpop.permute.xlu0 %81
    %v84 = vperm.slane %v60, 2
    %v85 = vmul.f32 %v82, %v84
    %v86 = vadd.f32 %v79, %v85
    %v87 = vmax.f32 %v86, 0.0
    %v88 = vpack.c.bf16 %v87, %v87
    %v89 = vld [vmem:[#allocation2] sm:$0xf]
    %v90 = vld [vmem:[#allocation2 + $0x4] sm:$0xf]
    %v91 = vld [vmem:[#allocation2 + $0x8] sm:$0xf]
    %v92 = vld [vmem:[#allocation2 + $0xc] sm:$0xf]
    %v93 = vld [vmem:[#allocation2 + $0x10] sm:$0xf]
    %v94 = vld [vmem:[#allocation2 + $0x14] sm:$0xf]
    %v95 = vld [vmem:[#allocation2 + $0x18] sm:$0xf]
    %v96 = vld [vmem:[#allocation2 + $0x1c] sm:$0xf]
    %v97 = vld [vmem:[#allocation2 + $0x20] sm:$0xf]
    %v98 = vld [vmem:[#allocation2 + $0x24] sm:$0xf]
    %v99 = vld [vmem:[#allocation2 + $0x28] sm:$0xf]
    %v100 = vld [vmem:[#allocation2 + $0x2c] sm:$0xf]
    %v101 = vld [vmem:[#allocation2 + $0x30] sm:$0xf]
    %v102 = vld [vmem:[#allocation2 + $0x34] sm:$0xf]
    %v103 = vld [vmem:[#allocation2 + $0x38] sm:$0xf]
    %v104 = vld [vmem:[#allocation2 + $0x3c] sm:$0xf]
    %v105 = vld [vmem:[%s4] sm:$0x1]
    %v107 = vperm.slane %v105, 0
    %v125 = vunpack.c.l.b16 %v89
    %v126 = vunpack.c.l.b16 %v90
    %v127 = vunpack.c.l.b16 %v91
    %v128 = vunpack.c.l.b16 %v92
    %v129 = vunpack.c.l.b16 %v93
    %v130 = vunpack.c.l.b16 %v94
    %v131 = vunpack.c.l.b16 %v95
    %v132 = vunpack.c.l.b16 %v96
    %v133 = vunpack.c.l.b16 %v97
    %v134 = vunpack.c.l.b16 %v98
    %v135 = vunpack.c.l.b16 %v99
    %v136 = vunpack.c.l.b16 %v100
    %v137 = vunpack.c.l.b16 %v101
    %v138 = vunpack.c.l.b16 %v102
    %v139 = vunpack.c.l.b16 %v103
    %v140 = vunpack.c.l.b16 %v104
    %v141 = vpack.c.b16 %v126, %v125
    %v142 = vpack.c.b16 %v128, %v127
    %v143 = vpack.c.b16 %v130, %v129
    %v144 = vpack.c.b16 %v132, %v131
    %v145 = vpack.c.b16 %v134, %v133
    %v146 = vpack.c.b16 %v136, %v135
    %v147 = vpack.c.b16 %v138, %v137
    %v148 = vpack.c.b16 %v140, %v139
    %157 = vmatpush.bf16.msra.mxu0 %v148
    %158 = vmatpush.bf16.msra.mxu0 %v147
    %159 = vmatpush.bf16.msra.mxu0 %v146
    %160 = vmatpush.bf16.msra.mxu0 %v145
    %161 = vmatpush.bf16.msra.mxu0 %v144
    %162 = vmatpush.bf16.msra.mxu0 %v143
    %163 = vmatpush.bf16.msra.mxu0 %v142
    %164 = vmatpush.bf16.msra.mxu0 %v141
    %165 = vmatmul.bf16.gmra.mxu0 %v88
    %v166 = vpop.f32.mrf.mxu0
    %v167 = vadd.f32 %v107, %v166
    %v168 = vpop.f32.mrf.mxu0
    %169 = vdwg.mxu0
    %v170 = vmax.f32 %v167, 0.0
    %v171 = vpack.c.bf16 %v170, %v170
    %v172 = vld [vmem:[#allocation5] sm:$0xf]
    %v173 = vld [vmem:[#allocation5 + $0x4] sm:$0xf]
    %v174 = vld [vmem:[#allocation5 + $0x8] sm:$0xf]
    %v175 = vld [vmem:[#allocation5 + $0xc] sm:$0xf]
    %v176 = vld [vmem:[#allocation5 + $0x10] sm:$0xf]
    %v177 = vld [vmem:[#allocation5 + $0x14] sm:$0xf]
    %v178 = vld [vmem:[#allocation5 + $0x18] sm:$0xf]
    %v179 = vld [vmem:[#allocation5 + $0x1c] sm:$0xf]
    %v180 = vld [vmem:[#allocation5 + $0x20] sm:$0xf]
    %v181 = vld [vmem:[#allocation5 + $0x24] sm:$0xf]
    %v182 = vld [vmem:[#allocation5 + $0x28] sm:$0xf]
    %v183 = vld [vmem:[#allocation5 + $0x2c] sm:$0xf]
    %v184 = vld [vmem:[#allocation5 + $0x30] sm:$0xf]
    %v185 = vld [vmem:[#allocation5 + $0x34] sm:$0xf]
    %v186 = vld [vmem:[#allocation5 + $0x38] sm:$0xf]
    %v187 = vld [vmem:[#allocation5 + $0x3c] sm:$0xf]
    %v188 = vld [vmem:[%s6] sm:$0x1]
    %v190 = vperm.slane %v188, 0
    %v208 = vunpack.c.l.b16 %v172
    %v209 = vunpack.c.l.b16 %v173
    %v210 = vunpack.c.l.b16 %v174
    %v211 = vunpack.c.l.b16 %v175
    %v212 = vunpack.c.l.b16 %v176
    %v213 = vunpack.c.l.b16 %v177
    %v214 = vunpack.c.l.b16 %v178
    %v215 = vunpack.c.l.b16 %v179
    %v216 = vunpack.c.l.b16 %v180
    %v217 = vunpack.c.l.b16 %v181
    %v218 = vunpack.c.l.b16 %v182
    %v219 = vunpack.c.l.b16 %v183
    %v220 = vunpack.c.l.b16 %v184
    %v221 = vunpack.c.l.b16 %v185
    %v222 = vunpack.c.l.b16 %v186
    %v223 = vunpack.c.l.b16 %v187
    %v224 = vpack.c.b16 %v209, %v208
    %v225 = vpack.c.b16 %v211, %v210
    %v226 = vpack.c.b16 %v213, %v212
    %v227 = vpack.c.b16 %v215, %v214
    %v228 = vpack.c.b16 %v217, %v216
    %v229 = vpack.c.b16 %v219, %v218
    %v230 = vpack.c.b16 %v221, %v220
    %v231 = vpack.c.b16 %v223, %v222
    %240 = vmatpush.bf16.msra.mxu0 %v231
    %241 = vmatpush.bf16.msra.mxu0 %v230
    %242 = vmatpush.bf16.msra.mxu0 %v229
    %243 = vmatpush.bf16.msra.mxu0 %v228
    %244 = vmatpush.bf16.msra.mxu0 %v227
    %245 = vmatpush.bf16.msra.mxu0 %v226
    %246 = vmatpush.bf16.msra.mxu0 %v225
    %247 = vmatpush.bf16.msra.mxu0 %v224
    %248 = vmatmul.bf16.gmra.mxu0 %v171
    %v249 = vpop.f32.mrf.mxu0
    %v250 = vadd.f32 %v190, %v249
    %v251 = vpop.f32.mrf.mxu0
    %252 = vdwg.mxu0
    %253 = vst [vmem:[#allocation7] sm:$0xff] %v250
    // Predicated region
    $region38: #{tpu_custom_call.1} parent=1 // pred_check
      _
    $region39: #{tpu_custom_call.1} parent=1 // pred_check_branch
      %255 = sbr.rel (0) target = $region41
    $region40: #{tpu_custom_call.1} parent=1 // pred_region
      %257 = vsyncadd [#allocation4], 0
      %s259 = sshll.u32 [#allocation7], 4
      %s260 = int_to_ptr.vmem [resolvable:$true] %s259
      %s261 = sshll.u32 %s7, 4
      %s262 = int_to_ptr.hbm [resolvable:$true] %s261
      %264 = dma.vmem_to_hbm [thread:$0]  %s260, 128, %s262, [#allocation4]
    $region41: #{tpu_custom_call.1} parent=1 // pred_fallthru
      _
    // Predicated region
    $region42: #{tpu_custom_call.1} parent=1 // pred_check
      _
    $region43: #{tpu_custom_call.1} parent=1 // pred_check_branch
      %266 = sbr.rel (0) target = $region45
    $region44: #{tpu_custom_call.1} parent=1 // pred_region
      %268 = dma.done [#allocation4], 128
    $region45: #{tpu_custom_call.1} parent=1 // pred_fallthru
      _
    %269 = vsyncpa [#allocation3], 1
    %270 = vsyncpa [#allocation6], 1
    %271 = vsyncpa [#allocation4], 1

</llo_original>
